<compile_context>
chip_gen: v7x
topology: tpu7x:2x2x1
jax: 0.10.0
libtpu: 0.0.40
codegen_flags: <defaults>
</compile_context>

<pallas_src>
import functools

import jax
import jax.numpy as jnp
from jax.experimental import pallas as pl
from jax.experimental.pallas import tpu as pltpu

H = W = 224
HW = H * W


# --------------------------------------------------------------------------
# Kernel: fused channel-mean + spatial GAP (the only real HBM traffic).
#   out[f] = mean over (C*H*W) of rgb frame f
# == rgb.mean(2) followed by the backbone's spatial GAP after the
# (-1, 3, 224, 224) regrouping (which is just a wrapper reshape of scalars).
# rgb is streamed from HBM exactly once; only F scalars are written back.
# --------------------------------------------------------------------------
def _frame_mean_kernel(x_ref, o_ref, acc_ref, *, inv_total):
    j = pl.program_id(1)

    @pl.when(j == 0)
    def _():
        acc_ref[...] = jnp.zeros_like(acc_ref)

    # Lane-dense partial sum: (col/128 - 1) VPU vreg adds + one XLU lane reduce
    # per chunk, all hidden under the HBM DMA of the next block.
    acc_ref[...] += jnp.sum(x_ref[...], axis=-1, keepdims=True)

    @pl.when(j == pl.num_programs(1) - 1)
    def _():
        o_ref[...] = acc_ref[...] * inv_total      # scale + store once per frame block


def _pick_tiles(n_frames, chw, block_budget_bytes):
    """Choose (tf, col) for 2-D (tf, col) blocks of an (F, C*H*W) f32 array.

    Budget accounting: block_budget_bytes is a per-buffer cap; the real
    resident footprint is ~2x that (Pallas double-buffers each input spec)
    plus tiny output/scratch buffers.  The default 2 MiB cap therefore lands
    at ~4-5 MiB resident — comfortably inside v5e's 16 MiB / v6e-v7x's 32 MiB
    default scoped VMEM, so no vmem_limit_bytes override is needed.
    """
    itemsize = 4

    # Frame tile = second-minor dim: must be a multiple of 8 (sublane tiling)
    # or the full frame count.  Prefer the smallest aligned tile: maximises
    # frame-axis grid steps (v7x megacore sharding across 2 TCs) and leaves
    # the whole budget to the lane axis (large contiguous per-frame DMA).
    if n_frames % 8 == 0:
        tf = 8
    else:
        tf = n_frames                   # full-extent block satisfies the tiling rule
    tf_padded = ((tf + 7) // 8) * 8     # account for sublane padding in the budget

    # Lane tile: multiple of 128 dividing C*H*W (150528 = 1176*128), as large
    # as fits the per-block budget, but small enough that the grid has >= 4
    # total steps so the auto-pipeline overlaps DMA with the reduction.
    if chw % 128 != 0:
        return tf, chw                  # fallback: full-row block (rare / non-224 sizes)
    max_col = max(128, (block_budget_bytes // (tf_padded * itemsize)) // 128 * 128)
    cols = [128 * k for k in range(1, chw // 128 + 1)
            if chw % (128 * k) == 0 and 128 * k <= max_col]
    frame_steps = n_frames // tf
    good = [c for c in cols if frame_steps * (chw // c) >= 4]
    col = max(good) if good else max(cols)
    return tf, col


def frame_mean(x2, *, block_budget_bytes=2 * 1024 * 1024):
    """x2: (F, C*H*W) float32 -> (F, 1) per-frame mean over (C, H, W)."""
    n_frames, chw = x2.shape
    tf, col = _pick_tiles(n_frames, chw, block_budget_bytes)
    inv = 1.0 / float(chw)
    grid = (n_frames // tf, chw // col)          # frames parallel, lane chunks reduce (last)
    kernel = functools.partial(_frame_mean_kernel, inv_total=inv)
    return pl.pallas_call(
        kernel,
        out_shape=jax.ShapeDtypeStruct((n_frames, 1), jnp.float32),
        grid=grid,
        in_specs=[pl.BlockSpec((tf, col), lambda i, j: (i, j))],
        out_specs=pl.BlockSpec((tf, 1), lambda i, j: (i, 0)),
        scratch_shapes=[pltpu.VMEM((tf, 1), jnp.float32)],
        compiler_params=pltpu.CompilerParams(
            dimension_semantics=("parallel", "arbitrary")),
    )(x2)


# --------------------------------------------------------------------------
# Head: synthetic trunk Linear(3,1280)+ReLU, folded classifier+output_layer
# Linear(1280,2) (W23 = w2@w3, b23 = b2@w3 + b3, folded offline), temporal
# mean commuted inside the affine layer (exact).  Touches <70 KB total, so it
# stays in plain XLA — a second pallas_call costs more than it saves.
# --------------------------------------------------------------------------
def head_seq(pooled3, p):
    hp = jax.lax.Precision.HIGHEST
    h = jnp.maximum(
        jnp.einsum("bgc,ch->bgh", pooled3, p["w1"], precision=hp) + p["b1"], 0.0)
    hg = jnp.mean(h, axis=1)                                 # temporal mean over G groups
    return jnp.dot(hg, p["w23"], precision=hp) + p["b23"][0]  # (B, 2)


# --------------------------------------------------------------------------
# Parameters (deterministic, PyTorch nn.Linear-style uniform init) + offline fold.
# --------------------------------------------------------------------------
def init_params(key):
    ks = jax.random.split(key, 6)

    def lin(kw, kb, fan_in, fan_out):
        bound = float(fan_in) ** -0.5
        w = jax.random.uniform(kw, (fan_in, fan_out), jnp.float32, -bound, bound)
        b = jax.random.uniform(kb, (1, fan_out), jnp.float32, -bound, bound)
        return w, b

    w1, b1 = lin(ks[0], ks[1], 3, 1280)      # synthetic backbone trunk
    w2, b2 = lin(ks[2], ks[3], 1280, 1000)   # synthetic backbone classifier -> 1000
    w3, b3 = lin(ks[4], ks[5], 1000, 2)      # exact: nn.Linear(1000, 2)
    return dict(w1=w1, b1=b1, w2=w2, b2=b2, w3=w3, b3=b3)


def fold_params(params):
    """Fold Linear(1280,1000) into Linear(1000,2) (no nonlinearity in between)."""
    hp = jax.lax.Precision.HIGHEST
    w23 = jnp.dot(params["w2"], params["w3"], precision=hp)                 # (1280, 2)
    b23 = jnp.dot(params["b2"], params["w3"], precision=hp) + params["b3"]  # (1, 2)
    return dict(w1=params["w1"], b1=params["b1"], w23=w23, b23=b23)


# --------------------------------------------------------------------------
# Full forward (matches MYNET.forward step-by-step).
# --------------------------------------------------------------------------
def mynet_forward(rgb, folded_params, sequence_size):
    B, S, C, h, w = rgb.shape
    assert (h, w) == (H, W) and S == sequence_size and (B * S) % 3 == 0

    n_frames = B * S
    x2 = rgb.reshape(n_frames, C * h * w)       # channels folded onto the lane axis
    fm = frame_mean(x2)                         # (F, 1) == GAP(rgb.mean(2)) per frame
    pooled3 = fm.reshape(B, S // 3, 3)          # regroup triples == reshape(-1,3,224,224)+GAP
    return head_seq(pooled3, folded_params)     # (B, 2) head + output_layer + mean(1)


# Pure-JAX reference of the same (synthetic-backbone) forward, unfused.
def reference_forward(rgb, params, sequence_size):
    hp = jax.lax.Precision.HIGHEST
    B, S, C, h, w = rgb.shape
    gray = jnp.mean(rgb, axis=2)                                    # rgb.mean(2)
    frames = gray.reshape(-1, 3, h, w)
    pooled = jnp.mean(frames, axis=(2, 3))                          # GAP
    hid = jnp.maximum(jnp.dot(pooled, params["w1"], precision=hp) + params["b1"], 0.0)
    feats = jnp.dot(hid, params["w2"], precision=hp) + params["b2"]
    logits = jnp.dot(feats, params["w3"], precision=hp) + params["b3"]
    temporal = logits.reshape(B, sequence_size // 3, 2)
    return jnp.mean(temporal, axis=1)


if __name__ == "__main__":
    B = 2
    sequence_size = 3  # frames grouped in triples
    key = jax.random.PRNGKey(0)
    k_in, k_p = jax.random.split(key)

    rgb = jax.random.normal(k_in, (B, sequence_size, 3, H, W), jnp.float32)
    params = init_params(k_p)
    folded = fold_params(params)

    out = jax.block_until_ready(mynet_forward(rgb, folded, sequence_size))
    assert out.shape == (B, 2) and out.dtype == jnp.float32

    ref = jax.block_until_ready(reference_forward(rgb, params, sequence_size))
    assert jnp.allclose(out, ref, atol=1e-3, rtol=1e-2)

    print("KERNEL_OK")
</pallas_src>

<mosaic_0001>
module attributes {stable_mosaic.version = 11 : i64} {
  func.func @_frame_mean_kernel(%arg0: i32, %arg1: i32, %arg2: memref<6x37632xf32, #tpu.memory_space<vmem>>, %arg3: memref<6x1xf32, #tpu.memory_space<vmem>>, %arg4: memref<6x1xf32, #tpu.memory_space<vmem>>) attributes {dimension_semantics = [#tpu.dimension_semantics<parallel>, #tpu.dimension_semantics<arbitrary>], iteration_bounds = array<i64: 1, 4>, scalar_prefetch = 0 : i64, scratch_operands = 1 : i64, tpu.core_type = #tpu.core_type<tc>, window_params = [{transform_indices = @transform_0, window_bounds = array<i64: 6, 37632>}, {transform_indices = @transform_1, window_bounds = array<i64: 6, 1>}]} {
    %c0_i32 = arith.constant 0 : i32
    %0 = arith.cmpi eq, %arg1, %c0_i32 : i32
    %1 = arith.extui %0 : i1 to i32
    %c0_i32_0 = arith.constant 0 : i32
    %2 = arith.cmpi ne, %1, %c0_i32_0 : i32
    scf.if %2 {
      %cst_7 = arith.constant 0.000000e+00 : f32
      %12 = vector.broadcast %cst_7 : f32 to vector<6x1xf32>
      %c0_8 = arith.constant 0 : index
      %c0_9 = arith.constant 0 : index
      %13 = vector.load %arg4[%c0_8, %c0_9] : memref<6x1xf32, #tpu.memory_space<vmem>>, vector<6x1xf32>
      tpu.vector_store %arg4[%c0_8, %c0_9], %12 {strides = array<i32>} : memref<6x1xf32, #tpu.memory_space<vmem>>, vector<6x1xf32>,
    } else {
    }
    %c0 = arith.constant 0 : index
    %c0_1 = arith.constant 0 : index
    %3 = vector.load %arg4[%c0, %c0_1] : memref<6x1xf32, #tpu.memory_space<vmem>>, vector<6x1xf32>
    %c0_2 = arith.constant 0 : index
    %c0_3 = arith.constant 0 : index
    %4 = vector.load %arg2[%c0_2, %c0_3] : memref<6x37632xf32, #tpu.memory_space<vmem>>, vector<6x37632xf32>
    %cst = arith.constant dense<0.000000e+00> : vector<6xf32>
    %5 = vector.multi_reduction <add>, %4, %cst [1] : vector<6x37632xf32> to vector<6xf32>
    %6 = vector.shape_cast %5 : vector<6xf32> to vector<6x1xf32>
    %7 = arith.addf %3, %6 : vector<6x1xf32>
    %c0_4 = arith.constant 0 : index
    %c0_5 = arith.constant 0 : index
    %8 = vector.load %arg4[%c0_4, %c0_5] : memref<6x1xf32, #tpu.memory_space<vmem>>, vector<6x1xf32>
    tpu.vector_store %arg4[%c0_4, %c0_5], %7 {strides = array<i32>} : memref<6x1xf32, #tpu.memory_space<vmem>>, vector<6x1xf32>,
    %c3_i32 = arith.constant 3 : i32
    %9 = arith.cmpi eq, %arg1, %c3_i32 : i32
    %10 = arith.extui %9 : i1 to i32
    %c0_i32_6 = arith.constant 0 : i32
    %11 = arith.cmpi ne, %10, %c0_i32_6 : i32
    scf.if %11 {
      %c0_7 = arith.constant 0 : index
      %c0_8 = arith.constant 0 : index
      %12 = vector.load %arg4[%c0_7, %c0_8] : memref<6x1xf32, #tpu.memory_space<vmem>>, vector<6x1xf32>
      %cst_9 = arith.constant 6.64328218E-6 : f32
      %13 = vector.broadcast %cst_9 : f32 to vector<6x1xf32>
      %14 = arith.mulf %12, %13 : vector<6x1xf32>
      %c0_10 = arith.constant 0 : index
      %c0_11 = arith.constant 0 : index
      %15 = vector.load %arg3[%c0_10, %c0_11] : memref<6x1xf32, #tpu.memory_space<vmem>>, vector<6x1xf32>
      tpu.vector_store %arg3[%c0_10, %c0_11], %14 {strides = array<i32>} : memref<6x1xf32, #tpu.memory_space<vmem>>, vector<6x1xf32>,
    } else {
    }
    return
  }
  func.func @transform_0(%arg0: i32, %arg1: i32) -> (i32, i32) {
    %c0_i32 = arith.constant 0 : i32
    return %arg0, %arg1 : i32, i32
  }
  func.func @transform_1(%arg0: i32, %arg1: i32) -> (i32, i32) {
    %c0_i32 = arith.constant 0 : i32
    %c0_i32_0 = arith.constant 0 : i32
    return %arg0, %c0_i32 : i32, i32
  }
}

</mosaic_0001>

<llo_original>
// kernel: tpu_custom_call.1
$region0: #{tpu_custom_call.1}
  #allocation0 [shape = 'u32[]', space=smem, size = 0x4, offset = 0x4, fixed_abs, tag = 'smem constant byte address 0x4 - core index']
  #allocation1 [shape = 'u32[144,128]{1,0:T(1,128)}', space=vmem, size = 0x12000, scoped, tag = 'internal scratch']
  #allocation2 [shape = 'f32[6,1]{1,0:T(8,128)}', space=vmem, size = 0x1000, scoped, tag = 'scratch operand']
  %s0 = inlined_call_operand.hbm [shape: f32[6,150528], index: 0, kind: input, shape index: {}]
  %s1 = inlined_call_operand.vmem [shape: f32[6,1], index: 1, kind: output, shape index: {}]
  %s2 = sld [smem:[#allocation0]]
  $region49: #{tpu_custom_call.1} parent=0
    _
  %s4 = ssub.s32 1, %s2
  %s5 = scalar_select 0, %s4, %s2
  $region1: #{tpu_custom_call.1} parent=0
    #allocation3 [shape = 'u8[2408448]{0}', space=vmem, size = 0x24c000, scoped, tag = 'input window, operand 0']
    #allocation4 [shape = 's32[2]{0}', space=sflag, size = 0x8, scoped, tag = 'scoped memory for tpu_custom_call.1']
    %6 = vsyncpa [#allocation4], 0
    %s7 = scalar_lea.sflag [#allocation4], 1
    %8 = vsyncpa %s7, 0
    loop: start=0, step=1, limit=6
    $region2: #{tpu_custom_call.1} parent=1 // loop_pre_header
      _
    $region3: #{tpu_custom_call.1} parent=1 // loop_header
      %s10 = sphi 0, %s14
      %p11 = scmp.ge.s32.totalorder %s10, 6
      %s17 = sphi 0, %s29
      %s18 = sphi 0, %s25
      %s19 = sphi 0, %s17
      %s20 = sphi 0, %s18
      %s21 = sphi 0, %s19
      %s22 = sphi 0, %s20
      %s34 = sphi 0, %s36
      %s37 = sphi 0, %s34
      %s38 = sphi 0, %s37
      %s54 = sphi 0, %s38
      %s60 = sphi 0, %s62
      %s63 = sphi 0, %s60
      %s64 = sphi 0, %s63
      %s80 = sphi 0, %s64
    $region4: #{tpu_custom_call.1} parent=1 // loop_header_branch
      %13 = sbr.rel (%p11) target = $region8
    $region5: #{tpu_custom_call.1} parent=1 // loop_body
      %s15 = ssub.s32 %s10, 1
      %s16 = ssub.s32 %s10, 2
      %s23 = sadd.s32 1, %s18
      %p24 = scmp.ge.s32.totalorder %s23, 4
      %s25 = scalar_select %p24, 0, %s23
      %s26 = sadd.s32 1, %s17
      %s27 = scalar_select %p24, %s26, %s17
      %p28 = scmp.ge.s32.totalorder %s27, 1
      %s29 = scalar_select %p28, 0, %s27
      %s30 = ssub.s32 %s17, %s29
      %s31 = ssub.s32 %s18, %s25
      %s32 = sor.u32 %s30, %s31
      %p33 = scmp.eq.s32.totalorder %s32, 0
      %s35 = sadd.s32 %s34, 1
      %s36 = scalar_select %p33, %s34, %s35
      %p39 = pneg %p33
      %p40 = scmp.eq.s32.totalorder %s10, 3
      %p41 = por %p39, %p40
      %p42 = scmp.ne.s32.totalorder %s34, %s37
      %p43 = scmp.eq.s32.totalorder %s10, 0
      %p44 = por %p42, %p43
      %p45 = scmp.ne.s32.totalorder %s34, %s37
      %p46 = scmp.eq.s32.totalorder %s15, 3
      %p47 = por %p45, %p46
      %p48 = scmp.ne.s32.totalorder %s37, %s38
      %p49 = scmp.eq.s32.totalorder %s15, 0
      %p50 = por %p48, %p49
      %p51 = scmp.ne.s32.totalorder %s37, %s38
      %p52 = scmp.eq.s32.totalorder %s16, 3
      %p53 = por %p51, %p52
      %p55 = scmp.ne.s32.totalorder %s38, %s54
      %p56 = scmp.eq.s32.totalorder %s16, 0
      %p57 = por %p55, %p56
      %s58 = ssub.s32 %s17, %s29
      %p59 = scmp.eq.s32.totalorder %s58, 0
      %s61 = sadd.s32 %s60, 1
      %s62 = scalar_select %p59, %s60, %s61
      %p65 = pneg %p59
      %p66 = scmp.eq.s32.totalorder %s10, 3
      %p67 = por %p65, %p66
      %p68 = scmp.ne.s32.totalorder %s60, %s63
      %p69 = scmp.eq.s32.totalorder %s10, 0
      %p70 = por %p68, %p69
      %p71 = scmp.ne.s32.totalorder %s60, %s63
      %p72 = scmp.eq.s32.totalorder %s15, 3
      %p73 = por %p71, %p72
      %p74 = scmp.ne.s32.totalorder %s63, %s64
      %p75 = scmp.eq.s32.totalorder %s15, 0
      %p76 = por %p74, %p75
      %p77 = scmp.ne.s32.totalorder %s63, %s64
      %p78 = scmp.eq.s32.totalorder %s16, 3
      %p79 = por %p77, %p78
      %p81 = scmp.ne.s32.totalorder %s64, %s80
      %p82 = scmp.eq.s32.totalorder %s16, 0
      %p83 = por %p81, %p82
      %p84 = scmp.le.s32.totalorder 1, %s10
      %p85 = scmp.lt.s32.totalorder %s10, 5
      %p86 = pnand %p84, %p85
      %p87 = pneg %p86
      // Predicated region
      $region9: #{tpu_custom_call.1} parent=5 // pred_check
        _
      $region10: #{tpu_custom_call.1} parent=5 // pred_check_branch
        %89 = sbr.rel (%p86) target = $region12
      $region11: #{tpu_custom_call.1} parent=5 // pred_region
        %s90 = ssub.s32 %s10, 1
      $region12: #{tpu_custom_call.1} parent=5 // pred_fallthru
        _
      %p91 = scmp.lt.s32.totalorder %s10, 4
      // Predicated region
      $region13: #{tpu_custom_call.1} parent=5 // pred_check
        %p92 = pneg %p91
      $region14: #{tpu_custom_call.1} parent=5 // pred_check_branch
        %94 = sbr.rel (%p92) target = $region16
      $region15: #{tpu_custom_call.1} parent=5 // pred_region
        // Predicated region
        $region17: #{tpu_custom_call.1} parent=15 // pred_check
          %p95 = pneg %p44
        $region18: #{tpu_custom_call.1} parent=15 // pred_check_branch
          %97 = sbr.rel (%p95) target = $region20
        $region19: #{tpu_custom_call.1} parent=15 // pred_region
          %s98 = sand.u32 %s34, 1
          %s99 = scalar_lea.sflag [#allocation4], %s98
          %s100 = sand.u32 %s34, 1
          %s101 = smul.addr %s100, 2352
          %s102 = scalar_lea.vmem [#allocation3], %s101
          %s103 = smul.u32 294, %s18
          %s105 = ssub.s32 37632, 37632
          %106 = vsyncadd %s99, %s105
          %s107 = smul.addr %s17, 1176
          %s108 = sadd.s32 %s103, %s107
          %s109 = smul.addr %s108, 128
          %s110 = scalar_lea.hbm %s0, %s109
          %s112 = sshll.u32 %s102, 4
          %s113 = int_to_ptr.vmem [resolvable:$true] %s112
          %115 = dma.hbm_to_vmem [thread:$0]  %s110, 37632, %s113, %s99
        $region20: #{tpu_custom_call.1} parent=15 // pred_fallthru
          _
      $region16: #{tpu_custom_call.1} parent=5 // pred_fallthru
        _
      %p116 = scmp.le.s32.totalorder 1, %s10
      %p117 = scmp.lt.s32.totalorder %s10, 5
      %p118 = pnand %p116, %p117
      %p119 = pneg %p118
      // Predicated region
      $region21: #{tpu_custom_call.1} parent=5 // pred_check
        _
      $region22: #{tpu_custom_call.1} parent=5 // pred_check_branch
        %121 = sbr.rel (%p118) target = $region24
      $region23: #{tpu_custom_call.1} parent=5 // pred_region
        %s122 = ssub.s32 %s10, 1
        %s123 = sand.u32 %s37, 1
        %s124 = scalar_lea.sflag [#allocation4], %s123
        %s125 = sand.u32 %s37, 1
        %s126 = smul.addr %s125, 2352
        %s127 = scalar_lea.vmem [#allocation3], %s126
        // Predicated region
        $region25: #{tpu_custom_call.1} parent=23 // pred_check
          %p128 = pneg %p50
        $region26: #{tpu_custom_call.1} parent=23 // pred_check_branch
          %130 = sbr.rel (%p128) target = $region28
        $region27: #{tpu_custom_call.1} parent=23 // pred_region
          %131 = dma.done %s124, 37632
        $region28: #{tpu_custom_call.1} parent=23 // pred_fallthru
          _
        %s132 = sand.u32 %s37, 1
        %s133 = scalar_lea.sflag [#allocation4], %s132
        %s134 = sand.u32 %s37, 1
        %s135 = smul.addr %s134, 2352
        %s136 = scalar_lea.vmem [#allocation3], %s135
        %p137 = pneg %p50
        %p138 = pneg %p47
        %p139 = pneg %p76
        %p140 = pneg %p73
        %p141 = scmp.lt.s32.totalorder %s19, 0
        %s142 = scalar_select %p141, %s19, 0
        %s143 = smul.addr %s142, 8
        %s144 = scalar_lea.vmem %s1, %s143
        %s145 = smul.u32 294, %s20
        %p146 = scmp.lt.s32.totalorder %s19, 0
        %s147 = scalar_select %p146, %s19, 0
        %s148 = smul.addr %s147, 8
        %s149 = scalar_lea.vmem %s1, %s148
        %p150 = scmp.eq.s32.totalorder %s20, 0
        // Predicated region
        $region29: #{tpu_custom_call.1} parent=23 // pred_check
          %p151 = pneg %p150
        $region30: #{tpu_custom_call.1} parent=23 // pred_check_branch
          %153 = sbr.rel (%p151) target = $region32
        $region31: #{tpu_custom_call.1} parent=23 // pred_region
          %vm154 = vcmask 5120
          %155 = vst.msk [vmem:[#allocation2] sm:$0x3f] %vm154, 0.0
        $region32: #{tpu_custom_call.1} parent=23 // pred_fallthru
          _
        %v156 = vld [vmem:[#allocation2] sm:$0x3f]
        %v157 = vld [vmem:[%s127] sm:$0x3f]
        %v158 = vld [vmem:[%s127 + $0x8] sm:$0x3f]
        %v159 = vld [vmem:[%s127 + $0x10] sm:$0x3f]
        %v160 = vld [vmem:[%s127 + $0x18] sm:$0x3f]
        %v161 = vld [vmem:[%s127 + $0x20] sm:$0x3f]
        %v162 = vld [vmem:[%s127 + $0x28] sm:$0x3f]
        %v163 = vld [vmem:[%s127 + $0x30] sm:$0x3f]
        %v164 = vld [vmem:[%s127 + $0x38] sm:$0x3f]
        %v165 = vld [vmem:[%s127 + $0x40] sm:$0x3f]
        %v166 = vld [vmem:[%s127 + $0x48] sm:$0x3f]
        %v167 = vld [vmem:[%s127 + $0x50] sm:$0x3f]
        %v168 = vld [vmem:[%s127 + $0x58] sm:$0x3f]
        %v169 = vld [vmem:[%s127 + $0x60] sm:$0x3f]
        %v170 = vld [vmem:[%s127 + $0x68] sm:$0x3f]
        %v171 = vld [vmem:[%s127 + $0x70] sm:$0x3f]
        %v172 = vld [vmem:[%s127 + $0x78] sm:$0x3f]
        %v173 = vld [vmem:[%s127 + $0x80] sm:$0x3f]
        %v174 = vld [vmem:[%s127 + $0x88] sm:$0x3f]
        %v175 = vld [vmem:[%s127 + $0x90] sm:$0x3f]
        %v176 = vld [vmem:[%s127 + $0x98] sm:$0x3f]
        %v177 = vld [vmem:[%s127 + $0xa0] sm:$0x3f]
        %v178 = vld [vmem:[%s127 + $0xa8] sm:$0x3f]
        %v179 = vld [vmem:[%s127 + $0xb0] sm:$0x3f]
        %v180 = vld [vmem:[%s127 + $0xb8] sm:$0x3f]
        %v181 = vld [vmem:[%s127 + $0xc0] sm:$0x3f]
        %v182 = vld [vmem:[%s127 + $0xc8] sm:$0x3f]
        %v183 = vld [vmem:[%s127 + $0xd0] sm:$0x3f]
        %v184 = vld [vmem:[%s127 + $0xd8] sm:$0x3f]
        %v185 = vld [vmem:[%s127 + $0xe0] sm:$0x3f]
        %v186 = vld [vmem:[%s127 + $0xe8] sm:$0x3f]
        %v187 = vld [vmem:[%s127 + $0xf0] sm:$0x3f]
        %v188 = vld [vmem:[%s127 + $0xf8] sm:$0x3f]
        %v189 = vld [vmem:[%s127 + $0x100] sm:$0x3f]
        %v190 = vld [vmem:[%s127 + $0x108] sm:$0x3f]
        %v191 = vld [vmem:[%s127 + $0x110] sm:$0x3f]
        %v192 = vld [vmem:[%s127 + $0x118] sm:$0x3f]
        %v193 = vld [vmem:[%s127 + $0x120] sm:$0x3f]
        %v194 = vld [vmem:[%s127 + $0x128] sm:$0x3f]
        %v195 = vld [vmem:[%s127 + $0x130] sm:$0x3f]
        %v196 = vld [vmem:[%s127 + $0x138] sm:$0x3f]
        %v197 = vld [vmem:[%s127 + $0x140] sm:$0x3f]
        %v198 = vld [vmem:[%s127 + $0x148] sm:$0x3f]
        %v199 = vld [vmem:[%s127 + $0x150] sm:$0x3f]
        %v200 = vld [vmem:[%s127 + $0x158] sm:$0x3f]
        %v201 = vld [vmem:[%s127 + $0x160] sm:$0x3f]
        %v202 = vld [vmem:[%s127 + $0x168] sm:$0x3f]
        %v203 = vld [vmem:[%s127 + $0x170] sm:$0x3f]
        %v204 = vld [vmem:[%s127 + $0x178] sm:$0x3f]
        %v205 = vld [vmem:[%s127 + $0x180] sm:$0x3f]
        %v206 = vld [vmem:[%s127 + $0x188] sm:$0x3f]
        %v207 = vld [vmem:[%s127 + $0x190] sm:$0x3f]
        %v208 = vld [vmem:[%s127 + $0x198] sm:$0x3f]
        %v209 = vld [vmem:[%s127 + $0x1a0] sm:$0x3f]
        %v210 = vld [vmem:[%s127 + $0x1a8] sm:$0x3f]
        %v211 = vld [vmem:[%s127 + $0x1b0] sm:$0x3f]
        %v212 = vld [vmem:[%s127 + $0x1b8] sm:$0x3f]
        %v213 = vld [vmem:[%s127 + $0x1c0] sm:$0x3f]
        %v214 = vld [vmem:[%s127 + $0x1c8] sm:$0x3f]
        %v215 = vld [vmem:[%s127 + $0x1d0] sm:$0x3f]
        %v216 = vld [vmem:[%s127 + $0x1d8] sm:$0x3f]
        %v217 = vld [vmem:[%s127 + $0x1e0] sm:$0x3f]
        %v218 = vld [vmem:[%s127 + $0x1e8] sm:$0x3f]
        %v219 = vld [vmem:[%s127 + $0x1f0] sm:$0x3f]
        %v220 = vld [vmem:[%s127 + $0x1f8] sm:$0x3f]
        %v221 = vld [vmem:[%s127 + $0x200] sm:$0x3f]
        %v222 = vld [vmem:[%s127 + $0x208] sm:$0x3f]
        %v223 = vld [vmem:[%s127 + $0x210] sm:$0x3f]
        %v224 = vld [vmem:[%s127 + $0x218] sm:$0x3f]
        %v225 = vld [vmem:[%s127 + $0x220] sm:$0x3f]
        %v226 = vld [vmem:[%s127 + $0x228] sm:$0x3f]
        %v227 = vld [vmem:[%s127 + $0x230] sm:$0x3f]
        %v228 = vld [vmem:[%s127 + $0x238] sm:$0x3f]
        %v229 = vld [vmem:[%s127 + $0x240] sm:$0x3f]
        %v230 = vld [vmem:[%s127 + $0x248] sm:$0x3f]
        %v231 = vld [vmem:[%s127 + $0x250] sm:$0x3f]
        %v232 = vld [vmem:[%s127 + $0x258] sm:$0x3f]
        %v233 = vld [vmem:[%s127 + $0x260] sm:$0x3f]
        %v234 = vld [vmem:[%s127 + $0x268] sm:$0x3f]
        %v235 = vld [vmem:[%s127 + $0x270] sm:$0x3f]
        %v236 = vld [vmem:[%s127 + $0x278] sm:$0x3f]
        %v237 = vld [vmem:[%s127 + $0x280] sm:$0x3f]
        %v238 = vld [vmem:[%s127 + $0x288] sm:$0x3f]
        %v239 = vld [vmem:[%s127 + $0x290] sm:$0x3f]
        %v240 = vld [vmem:[%s127 + $0x298] sm:$0x3f]
        %v241 = vld [vmem:[%s127 + $0x2a0] sm:$0x3f]
        %v242 = vld [vmem:[%s127 + $0x2a8] sm:$0x3f]
        %v243 = vld [vmem:[%s127 + $0x2b0] sm:$0x3f]
        %v244 = vld [vmem:[%s127 + $0x2b8] sm:$0x3f]
        %v245 = vld [vmem:[%s127 + $0x2c0] sm:$0x3f]
        %v246 = vld [vmem:[%s127 + $0x2c8] sm:$0x3f]
        %v247 = vld [vmem:[%s127 + $0x2d0] sm:$0x3f]
        %v248 = vld [vmem:[%s127 + $0x2d8] sm:$0x3f]
        %v249 = vld [vmem:[%s127 + $0x2e0] sm:$0x3f]
        %v250 = vld [vmem:[%s127 + $0x2e8] sm:$0x3f]
        %v251 = vld [vmem:[%s127 + $0x2f0] sm:$0x3f]
        %v252 = vld [vmem:[%s127 + $0x2f8] sm:$0x3f]
        %v253 = vld [vmem:[%s127 + $0x300] sm:$0x3f]
        %v254 = vld [vmem:[%s127 + $0x308] sm:$0x3f]
        %v255 = vld [vmem:[%s127 + $0x310] sm:$0x3f]
        %v256 = vld [vmem:[%s127 + $0x318] sm:$0x3f]
        %v257 = vld [vmem:[%s127 + $0x320] sm:$0x3f]
        %v258 = vld [vmem:[%s127 + $0x328] sm:$0x3f]
        %v259 = vld [vmem:[%s127 + $0x330] sm:$0x3f]
        %v260 = vld [vmem:[%s127 + $0x338] sm:$0x3f]
        %v261 = vld [vmem:[%s127 + $0x340] sm:$0x3f]
        %v262 = vld [vmem:[%s127 + $0x348] sm:$0x3f]
        %v263 = vld [vmem:[%s127 + $0x350] sm:$0x3f]
        %v264 = vld [vmem:[%s127 + $0x358] sm:$0x3f]
        %v265 = vld [vmem:[%s127 + $0x360] sm:$0x3f]
        %v266 = vld [vmem:[%s127 + $0x368] sm:$0x3f]
        %v267 = vld [vmem:[%s127 + $0x370] sm:$0x3f]
        %v268 = vld [vmem:[%s127 + $0x378] sm:$0x3f]
        %v269 = vld [vmem:[%s127 + $0x380] sm:$0x3f]
        %v270 = vld [vmem:[%s127 + $0x388] sm:$0x3f]
        %v271 = vld [vmem:[%s127 + $0x390] sm:$0x3f]
        %v272 = vld [vmem:[%s127 + $0x398] sm:$0x3f]
        %v273 = vld [vmem:[%s127 + $0x3a0] sm:$0x3f]
        %v274 = vld [vmem:[%s127 + $0x3a8] sm:$0x3f]
        %v275 = vld [vmem:[%s127 + $0x3b0] sm:$0x3f]
        %v276 = vld [vmem:[%s127 + $0x3b8] sm:$0x3f]
        %v277 = vld [vmem:[%s127 + $0x3c0] sm:$0x3f]
        %v278 = vld [vmem:[%s127 + $0x3c8] sm:$0x3f]
        %v279 = vld [vmem:[%s127 + $0x3d0] sm:$0x3f]
        %v280 = vld [vmem:[%s127 + $0x3d8] sm:$0x3f]
        %v281 = vld [vmem:[%s127 + $0x3e0] sm:$0x3f]
        %v282 = vld [vmem:[%s127 + $0x3e8] sm:$0x3f]
        %v283 = vld [vmem:[%s127 + $0x3f0] sm:$0x3f]
        %v284 = vld [vmem:[%s127 + $0x3f8] sm:$0x3f]
        %v285 = vld [vmem:[%s127 + $0x400] sm:$0x3f]
        %v286 = vld [vmem:[%s127 + $0x408] sm:$0x3f]
        %v287 = vld [vmem:[%s127 + $0x410] sm:$0x3f]
        %v288 = vld [vmem:[%s127 + $0x418] sm:$0x3f]
        %v289 = vld [vmem:[%s127 + $0x420] sm:$0x3f]
        %v290 = vld [vmem:[%s127 + $0x428] sm:$0x3f]
        %v291 = vld [vmem:[%s127 + $0x430] sm:$0x3f]
        %v292 = vld [vmem:[%s127 + $0x438] sm:$0x3f]
        %v293 = vld [vmem:[%s127 + $0x440] sm:$0x3f]
        %v294 = vld [vmem:[%s127 + $0x448] sm:$0x3f]
        %v295 = vld [vmem:[%s127 + $0x450] sm:$0x3f]
        %v296 = vld [vmem:[%s127 + $0x458] sm:$0x3f]
        %v297 = vld [vmem:[%s127 + $0x460] sm:$0x3f]
        %v298 = vld [vmem:[%s127 + $0x468] sm:$0x3f]
        %v299 = vld [vmem:[%s127 + $0x470] sm:$0x3f]
        %v300 = vld [vmem:[%s127 + $0x478] sm:$0x3f]
        %v301 = vld [vmem:[%s127 + $0x480] sm:$0x3f]
        %v302 = vld [vmem:[%s127 + $0x488] sm:$0x3f]
        %v303 = vld [vmem:[%s127 + $0x490] sm:$0x3f]
        %v304 = vld [vmem:[%s127 + $0x498] sm:$0x3f]
        %v305 = vld [vmem:[%s127 + $0x4a0] sm:$0x3f]
        %v306 = vld [vmem:[%s127 + $0x4a8] sm:$0x3f]
        %v307 = vld [vmem:[%s127 + $0x4b0] sm:$0x3f]
        %v308 = vld [vmem:[%s127 + $0x4b8] sm:$0x3f]
        %v309 = vld [vmem:[%s127 + $0x4c0] sm:$0x3f]
        %v310 = vld [vmem:[%s127 + $0x4c8] sm:$0x3f]
        %v311 = vld [vmem:[%s127 + $0x4d0] sm:$0x3f]
        %v312 = vld [vmem:[%s127 + $0x4d8] sm:$0x3f]
        %v313 = vld [vmem:[%s127 + $0x4e0] sm:$0x3f]
        %v314 = vld [vmem:[%s127 + $0x4e8] sm:$0x3f]
        %v315 = vld [vmem:[%s127 + $0x4f0] sm:$0x3f]
        %v316 = vld [vmem:[%s127 + $0x4f8] sm:$0x3f]
        %v317 = vld [vmem:[%s127 + $0x500] sm:$0x3f]
        %v318 = vld [vmem:[%s127 + $0x508] sm:$0x3f]
        %v319 = vld [vmem:[%s127 + $0x510] sm:$0x3f]
        %v320 = vld [vmem:[%s127 + $0x518] sm:$0x3f]
        %v321 = vld [vmem:[%s127 + $0x520] sm:$0x3f]
        %v322 = vld [vmem:[%s127 + $0x528] sm:$0x3f]
        %v323 = vld [vmem:[%s127 + $0x530] sm:$0x3f]
        %v324 = vld [vmem:[%s127 + $0x538] sm:$0x3f]
        %v325 = vld [vmem:[%s127 + $0x540] sm:$0x3f]
        %v326 = vld [vmem:[%s127 + $0x548] sm:$0x3f]
        %v327 = vld [vmem:[%s127 + $0x550] sm:$0x3f]
        %v328 = vld [vmem:[%s127 + $0x558] sm:$0x3f]
        %v329 = vld [vmem:[%s127 + $0x560] sm:$0x3f]
        %v330 = vld [vmem:[%s127 + $0x568] sm:$0x3f]
        %v331 = vld [vmem:[%s127 + $0x570] sm:$0x3f]
        %v332 = vld [vmem:[%s127 + $0x578] sm:$0x3f]
        %v333 = vld [vmem:[%s127 + $0x580] sm:$0x3f]
        %v334 = vld [vmem:[%s127 + $0x588] sm:$0x3f]
        %v335 = vld [vmem:[%s127 + $0x590] sm:$0x3f]
        %v336 = vld [vmem:[%s127 + $0x598] sm:$0x3f]
        %v337 = vld [vmem:[%s127 + $0x5a0] sm:$0x3f]
        %v338 = vld [vmem:[%s127 + $0x5a8] sm:$0x3f]
        %v339 = vld [vmem:[%s127 + $0x5b0] sm:$0x3f]
        %v340 = vld [vmem:[%s127 + $0x5b8] sm:$0x3f]
        %v341 = vld [vmem:[%s127 + $0x5c0] sm:$0x3f]
        %v342 = vld [vmem:[%s127 + $0x5c8] sm:$0x3f]
        %v343 = vld [vmem:[%s127 + $0x5d0] sm:$0x3f]
        %v344 = vld [vmem:[%s127 + $0x5d8] sm:$0x3f]
        %v345 = vld [vmem:[%s127 + $0x5e0] sm:$0x3f]
        %v346 = vld [vmem:[%s127 + $0x5e8] sm:$0x3f]
        %v347 = vld [vmem:[%s127 + $0x5f0] sm:$0x3f]
        %v348 = vld [vmem:[%s127 + $0x5f8] sm:$0x3f]
        %v349 = vld [vmem:[%s127 + $0x600] sm:$0x3f]
        %v350 = vld [vmem:[%s127 + $0x608] sm:$0x3f]
        %v351 = vld [vmem:[%s127 + $0x610] sm:$0x3f]
        %v352 = vld [vmem:[%s127 + $0x618] sm:$0x3f]
        %v353 = vld [vmem:[%s127 + $0x620] sm:$0x3f]
        %v354 = vld [vmem:[%s127 + $0x628] sm:$0x3f]
        %v355 = vld [vmem:[%s127 + $0x630] sm:$0x3f]
        %v356 = vld [vmem:[%s127 + $0x638] sm:$0x3f]
        %v357 = vld [vmem:[%s127 + $0x640] sm:$0x3f]
        %v358 = vld [vmem:[%s127 + $0x648] sm:$0x3f]
        %v359 = vld [vmem:[%s127 + $0x650] sm:$0x3f]
        %v360 = vld [vmem:[%s127 + $0x658] sm:$0x3f]
        %v361 = vld [vmem:[%s127 + $0x660] sm:$0x3f]
        %v362 = vld [vmem:[%s127 + $0x668] sm:$0x3f]
        %v363 = vld [vmem:[%s127 + $0x670] sm:$0x3f]
        %v364 = vld [vmem:[%s127 + $0x678] sm:$0x3f]
        %v365 = vld [vmem:[%s127 + $0x680] sm:$0x3f]
        %v366 = vld [vmem:[%s127 + $0x688] sm:$0x3f]
        %v367 = vld [vmem:[%s127 + $0x690] sm:$0x3f]
        %v368 = vld [vmem:[%s127 + $0x698] sm:$0x3f]
        %v369 = vld [vmem:[%s127 + $0x6a0] sm:$0x3f]
        %v370 = vld [vmem:[%s127 + $0x6a8] sm:$0x3f]
        %v371 = vld [vmem:[%s127 + $0x6b0] sm:$0x3f]
        %v372 = vld [vmem:[%s127 + $0x6b8] sm:$0x3f]
        %v373 = vld [vmem:[%s127 + $0x6c0] sm:$0x3f]
        %v374 = vld [vmem:[%s127 + $0x6c8] sm:$0x3f]
        %v375 = vld [vmem:[%s127 + $0x6d0] sm:$0x3f]
        %v376 = vld [vmem:[%s127 + $0x6d8] sm:$0x3f]
        %v377 = vld [vmem:[%s127 + $0x6e0] sm:$0x3f]
        %v378 = vld [vmem:[%s127 + $0x6e8] sm:$0x3f]
        %v379 = vld [vmem:[%s127 + $0x6f0] sm:$0x3f]
        %v380 = vld [vmem:[%s127 + $0x6f8] sm:$0x3f]
        %v381 = vld [vmem:[%s127 + $0x700] sm:$0x3f]
        %v382 = vld [vmem:[%s127 + $0x708] sm:$0x3f]
        %v383 = vld [vmem:[%s127 + $0x710] sm:$0x3f]
        %v384 = vld [vmem:[%s127 + $0x718] sm:$0x3f]
        %v385 = vld [vmem:[%s127 + $0x720] sm:$0x3f]
        %v386 = vld [vmem:[%s127 + $0x728] sm:$0x3f]
        %v387 = vld [vmem:[%s127 + $0x730] sm:$0x3f]
        %v388 = vld [vmem:[%s127 + $0x738] sm:$0x3f]
        %v389 = vld [vmem:[%s127 + $0x740] sm:$0x3f]
        %v390 = vld [vmem:[%s127 + $0x748] sm:$0x3f]
        %v391 = vld [vmem:[%s127 + $0x750] sm:$0x3f]
        %v392 = vld [vmem:[%s127 + $0x758] sm:$0x3f]
        %v393 = vld [vmem:[%s127 + $0x760] sm:$0x3f]
        %v394 = vld [vmem:[%s127 + $0x768] sm:$0x3f]
        %v395 = vld [vmem:[%s127 + $0x770] sm:$0x3f]
        %v396 = vld [vmem:[%s127 + $0x778] sm:$0x3f]
        %v397 = vld [vmem:[%s127 + $0x780] sm:$0x3f]
        %v398 = vld [vmem:[%s127 + $0x788] sm:$0x3f]
        %v399 = vld [vmem:[%s127 + $0x790] sm:$0x3f]
        %v400 = vld [vmem:[%s127 + $0x798] sm:$0x3f]
        %v401 = vld [vmem:[%s127 + $0x7a0] sm:$0x3f]
        %v402 = vld [vmem:[%s127 + $0x7a8] sm:$0x3f]
        %v403 = vld [vmem:[%s127 + $0x7b0] sm:$0x3f]
        %v404 = vld [vmem:[%s127 + $0x7b8] sm:$0x3f]
        %v405 = vld [vmem:[%s127 + $0x7c0] sm:$0x3f]
        %v406 = vld [vmem:[%s127 + $0x7c8] sm:$0x3f]
        %v407 = vld [vmem:[%s127 + $0x7d0] sm:$0x3f]
        %v408 = vld [vmem:[%s127 + $0x7d8] sm:$0x3f]
        %v409 = vld [vmem:[%s127 + $0x7e0] sm:$0x3f]
        %v410 = vld [vmem:[%s127 + $0x7e8] sm:$0x3f]
        %v411 = vld [vmem:[%s127 + $0x7f0] sm:$0x3f]
        %v412 = vld [vmem:[%s127 + $0x7f8] sm:$0x3f]
        %v413 = vld [vmem:[%s127 + $0x800] sm:$0x3f]
        %v414 = vld [vmem:[%s127 + $0x808] sm:$0x3f]
        %v415 = vld [vmem:[%s127 + $0x810] sm:$0x3f]
        %v416 = vld [vmem:[%s127 + $0x818] sm:$0x3f]
        %v417 = vld [vmem:[%s127 + $0x820] sm:$0x3f]
        %v418 = vld [vmem:[%s127 + $0x828] sm:$0x3f]
        %v419 = vld [vmem:[%s127 + $0x830] sm:$0x3f]
        %v420 = vld [vmem:[%s127 + $0x838] sm:$0x3f]
        %v421 = vld [vmem:[%s127 + $0x840] sm:$0x3f]
        %v422 = vld [vmem:[%s127 + $0x848] sm:$0x3f]
        %v423 = vld [vmem:[%s127 + $0x850] sm:$0x3f]
        %v424 = vld [vmem:[%s127 + $0x858] sm:$0x3f]
        %v425 = vld [vmem:[%s127 + $0x860] sm:$0x3f]
        %v426 = vld [vmem:[%s127 + $0x868] sm:$0x3f]
        %v427 = vld [vmem:[%s127 + $0x870] sm:$0x3f]
        %v428 = vld [vmem:[%s127 + $0x878] sm:$0x3f]
        %v429 = vld [vmem:[%s127 + $0x880] sm:$0x3f]
        %v430 = vld [vmem:[%s127 + $0x888] sm:$0x3f]
        %v431 = vld [vmem:[%s127 + $0x890] sm:$0x3f]
        %v432 = vld [vmem:[%s127 + $0x898] sm:$0x3f]
        %v433 = vld [vmem:[%s127 + $0x8a0] sm:$0x3f]
        %v434 = vld [vmem:[%s127 + $0x8a8] sm:$0x3f]
        %v435 = vld [vmem:[%s127 + $0x8b0] sm:$0x3f]
        %v436 = vld [vmem:[%s127 + $0x8b8] sm:$0x3f]
        %v437 = vld [vmem:[%s127 + $0x8c0] sm:$0x3f]
        %v438 = vld [vmem:[%s127 + $0x8c8] sm:$0x3f]
        %v439 = vld [vmem:[%s127 + $0x8d0] sm:$0x3f]
        %v440 = vld [vmem:[%s127 + $0x8d8] sm:$0x3f]
        %v441 = vld [vmem:[%s127 + $0x8e0] sm:$0x3f]
        %v442 = vld [vmem:[%s127 + $0x8e8] sm:$0x3f]
        %v443 = vld [vmem:[%s127 + $0x8f0] sm:$0x3f]
        %v444 = vld [vmem:[%s127 + $0x8f8] sm:$0x3f]
        %v445 = vld [vmem:[%s127 + $0x900] sm:$0x3f]
        %v446 = vld [vmem:[%s127 + $0x908] sm:$0x3f]
        %v447 = vld [vmem:[%s127 + $0x910] sm:$0x3f]
        %v448 = vld [vmem:[%s127 + $0x918] sm:$0x3f]
        %v449 = vld [vmem:[%s127 + $0x920] sm:$0x3f]
        %v450 = vld [vmem:[%s127 + $0x928] sm:$0x3f]
        %vm451 = vcmask 1045504
        %v452 = vsel %vm451, %v157, 0.0
        %v453 = vsel %vm451, %v158, 0.0
        %v454 = vadd.f32 %v452, %v453
        %v455 = vsel %vm451, %v159, 0.0
        %v456 = vadd.f32 %v454, %v455
        %v457 = vsel %vm451, %v160, 0.0
        %v458 = vadd.f32 %v456, %v457
        %v459 = vsel %vm451, %v161, 0.0
        %v460 = vadd.f32 %v458, %v459
        %v461 = vsel %vm451, %v162, 0.0
        %v462 = vadd.f32 %v460, %v461
        %v463 = vsel %vm451, %v163, 0.0
        %v464 = vadd.f32 %v462, %v463
        %v465 = vsel %vm451, %v164, 0.0
        %v466 = vadd.f32 %v464, %v465
        %v467 = vsel %vm451, %v165, 0.0
        %v468 = vadd.f32 %v466, %v467
        %v469 = vsel %vm451, %v166, 0.0
        %v470 = vadd.f32 %v468, %v469
        %v471 = vsel %vm451, %v167, 0.0
        %v472 = vadd.f32 %v470, %v471
        %v473 = vsel %vm451, %v168, 0.0
        %v474 = vadd.f32 %v472, %v473
        %v475 = vsel %vm451, %v169, 0.0
        %v476 = vadd.f32 %v474, %v475
        %v477 = vsel %vm451, %v170, 0.0
        %v478 = vadd.f32 %v476, %v477
        %v479 = vsel %vm451, %v171, 0.0
        %v480 = vadd.f32 %v478, %v479
        %v481 = vsel %vm451, %v172, 0.0
        %v482 = vadd.f32 %v480, %v481
        %v483 = vsel %vm451, %v173, 0.0
        %v484 = vadd.f32 %v482, %v483
        %v485 = vsel %vm451, %v174, 0.0
        %v486 = vadd.f32 %v484, %v485
        %v487 = vsel %vm451, %v175, 0.0
        %v488 = vadd.f32 %v486, %v487
        %v489 = vsel %vm451, %v176, 0.0
        %v490 = vadd.f32 %v488, %v489
        %v491 = vsel %vm451, %v177, 0.0
        %v492 = vadd.f32 %v490, %v491
        %v493 = vsel %vm451, %v178, 0.0
        %v494 = vadd.f32 %v492, %v493
        %v495 = vsel %vm451, %v179, 0.0
        %v496 = vadd.f32 %v494, %v495
        %v497 = vsel %vm451, %v180, 0.0
        %v498 = vadd.f32 %v496, %v497
        %v499 = vsel %vm451, %v181, 0.0
        %v500 = vadd.f32 %v498, %v499
        %v501 = vsel %vm451, %v182, 0.0
        %v502 = vadd.f32 %v500, %v501
        %v503 = vsel %vm451, %v183, 0.0
        %v504 = vadd.f32 %v502, %v503
        %v505 = vsel %vm451, %v184, 0.0
        %v506 = vadd.f32 %v504, %v505
        %v507 = vsel %vm451, %v185, 0.0
        %v508 = vadd.f32 %v506, %v507
        %v509 = vsel %vm451, %v186, 0.0
        %v510 = vadd.f32 %v508, %v509
        %v511 = vsel %vm451, %v187, 0.0
        %v512 = vadd.f32 %v510, %v511
        %v513 = vsel %vm451, %v188, 0.0
        %v514 = vadd.f32 %v512, %v513
        %v515 = vsel %vm451, %v189, 0.0
        %v516 = vadd.f32 %v514, %v515
        %v517 = vsel %vm451, %v190, 0.0
        %v518 = vadd.f32 %v516, %v517
        %v519 = vsel %vm451, %v191, 0.0
        %v520 = vadd.f32 %v518, %v519
        %v521 = vsel %vm451, %v192, 0.0
        %v522 = vadd.f32 %v520, %v521
        %v523 = vsel %vm451, %v193, 0.0
        %v524 = vadd.f32 %v522, %v523
        %v525 = vsel %vm451, %v194, 0.0
        %v526 = vadd.f32 %v524, %v525
        %v527 = vsel %vm451, %v195, 0.0
        %v528 = vadd.f32 %v526, %v527
        %v529 = vsel %vm451, %v196, 0.0
        %v530 = vadd.f32 %v528, %v529
        %v531 = vsel %vm451, %v197, 0.0
        %v532 = vadd.f32 %v530, %v531
        %v533 = vsel %vm451, %v198, 0.0
        %v534 = vadd.f32 %v532, %v533
        %v535 = vsel %vm451, %v199, 0.0
        %v536 = vadd.f32 %v534, %v535
        %v537 = vsel %vm451, %v200, 0.0
        %v538 = vadd.f32 %v536, %v537
        %v539 = vsel %vm451, %v201, 0.0
        %v540 = vadd.f32 %v538, %v539
        %v541 = vsel %vm451, %v202, 0.0
        %v542 = vadd.f32 %v540, %v541
        %v543 = vsel %vm451, %v203, 0.0
        %v544 = vadd.f32 %v542, %v543
        %v545 = vsel %vm451, %v204, 0.0
        %v546 = vadd.f32 %v544, %v545
        %v547 = vsel %vm451, %v205, 0.0
        %v548 = vadd.f32 %v546, %v547
        %v549 = vsel %vm451, %v206, 0.0
        %v550 = vadd.f32 %v548, %v549
        %v551 = vsel %vm451, %v207, 0.0
        %v552 = vadd.f32 %v550, %v551
        %v553 = vsel %vm451, %v208, 0.0
        %v554 = vadd.f32 %v552, %v553
        %v555 = vsel %vm451, %v209, 0.0
        %v556 = vadd.f32 %v554, %v555
        %v557 = vsel %vm451, %v210, 0.0
        %v558 = vadd.f32 %v556, %v557
        %v559 = vsel %vm451, %v211, 0.0
        %v560 = vadd.f32 %v558, %v559
        %v561 = vsel %vm451, %v212, 0.0
        %v562 = vadd.f32 %v560, %v561
        %v563 = vsel %vm451, %v213, 0.0
        %v564 = vadd.f32 %v562, %v563
        %v565 = vsel %vm451, %v214, 0.0
        %v566 = vadd.f32 %v564, %v565
        %v567 = vsel %vm451, %v215, 0.0
        %v568 = vadd.f32 %v566, %v567
        %v569 = vsel %vm451, %v216, 0.0
        %v570 = vadd.f32 %v568, %v569
        %v571 = vsel %vm451, %v217, 0.0
        %v572 = vadd.f32 %v570, %v571
        %v573 = vsel %vm451, %v218, 0.0
        %v574 = vadd.f32 %v572, %v573
        %v575 = vsel %vm451, %v219, 0.0
        %v576 = vadd.f32 %v574, %v575
        %v577 = vsel %vm451, %v220, 0.0
        %v578 = vadd.f32 %v576, %v577
        %v579 = vsel %vm451, %v221, 0.0
        %v580 = vadd.f32 %v578, %v579
        %v581 = vsel %vm451, %v222, 0.0
        %v582 = vadd.f32 %v580, %v581
        %v583 = vsel %vm451, %v223, 0.0
        %v584 = vadd.f32 %v582, %v583
        %v585 = vsel %vm451, %v224, 0.0
        %v586 = vadd.f32 %v584, %v585
        %v587 = vsel %vm451, %v225, 0.0
        %v588 = vadd.f32 %v586, %v587
        %v589 = vsel %vm451, %v226, 0.0
        %v590 = vadd.f32 %v588, %v589
        %v591 = vsel %vm451, %v227, 0.0
        %v592 = vadd.f32 %v590, %v591
        %v593 = vsel %vm451, %v228, 0.0
        %v594 = vadd.f32 %v592, %v593
        %v595 = vsel %vm451, %v229, 0.0
        %v596 = vadd.f32 %v594, %v595
        %v597 = vsel %vm451, %v230, 0.0
        %v598 = vadd.f32 %v596, %v597
        %v599 = vsel %vm451, %v231, 0.0
        %v600 = vadd.f32 %v598, %v599
        %v601 = vsel %vm451, %v232, 0.0
        %v602 = vadd.f32 %v600, %v601
        %v603 = vsel %vm451, %v233, 0.0
        %v604 = vadd.f32 %v602, %v603
        %v605 = vsel %vm451, %v234, 0.0
        %v606 = vadd.f32 %v604, %v605
        %v607 = vsel %vm451, %v235, 0.0
        %v608 = vadd.f32 %v606, %v607
        %v609 = vsel %vm451, %v236, 0.0
        %v610 = vadd.f32 %v608, %v609
        %v611 = vsel %vm451, %v237, 0.0
        %v612 = vadd.f32 %v610, %v611
        %v613 = vsel %vm451, %v238, 0.0
        %v614 = vadd.f32 %v612, %v613
        %v615 = vsel %vm451, %v239, 0.0
        %v616 = vadd.f32 %v614, %v615
        %v617 = vsel %vm451, %v240, 0.0
        %v618 = vadd.f32 %v616, %v617
        %v619 = vsel %vm451, %v241, 0.0
        %v620 = vadd.f32 %v618, %v619
        %v621 = vsel %vm451, %v242, 0.0
        %v622 = vadd.f32 %v620, %v621
        %v623 = vsel %vm451, %v243, 0.0
        %v624 = vadd.f32 %v622, %v623
        %v625 = vsel %vm451, %v244, 0.0
        %v626 = vadd.f32 %v624, %v625
        %v627 = vsel %vm451, %v245, 0.0
        %v628 = vadd.f32 %v626, %v627
        %v629 = vsel %vm451, %v246, 0.0
        %v630 = vadd.f32 %v628, %v629
        %v631 = vsel %vm451, %v247, 0.0
        %v632 = vadd.f32 %v630, %v631
        %v633 = vsel %vm451, %v248, 0.0
        %v634 = vadd.f32 %v632, %v633
        %v635 = vsel %vm451, %v249, 0.0
        %v636 = vadd.f32 %v634, %v635
        %v637 = vsel %vm451, %v250, 0.0
        %v638 = vadd.f32 %v636, %v637
        %v639 = vsel %vm451, %v251, 0.0
        %v640 = vadd.f32 %v638, %v639
        %v641 = vsel %vm451, %v252, 0.0
        %v642 = vadd.f32 %v640, %v641
        %v643 = vsel %vm451, %v253, 0.0
        %v644 = vadd.f32 %v642, %v643
        %v645 = vsel %vm451, %v254, 0.0
        %v646 = vadd.f32 %v644, %v645
        %v647 = vsel %vm451, %v255, 0.0
        %v648 = vadd.f32 %v646, %v647
        %v649 = vsel %vm451, %v256, 0.0
        %v650 = vadd.f32 %v648, %v649
        %v651 = vsel %vm451, %v257, 0.0
        %v652 = vadd.f32 %v650, %v651
        %v653 = vsel %vm451, %v258, 0.0
        %v654 = vadd.f32 %v652, %v653
        %v655 = vsel %vm451, %v259, 0.0
        %v656 = vadd.f32 %v654, %v655
        %v657 = vsel %vm451, %v260, 0.0
        %v658 = vadd.f32 %v656, %v657
        %v659 = vsel %vm451, %v261, 0.0
        %v660 = vadd.f32 %v658, %v659
        %v661 = vsel %vm451, %v262, 0.0
        %v662 = vadd.f32 %v660, %v661
        %v663 = vsel %vm451, %v263, 0.0
        %v664 = vadd.f32 %v662, %v663
        %v665 = vsel %vm451, %v264, 0.0
        %v666 = vadd.f32 %v664, %v665
        %v667 = vsel %vm451, %v265, 0.0
        %v668 = vadd.f32 %v666, %v667
        %v669 = vsel %vm451, %v266, 0.0
        %v670 = vadd.f32 %v668, %v669
        %v671 = vsel %vm451, %v267, 0.0
        %v672 = vadd.f32 %v670, %v671
        %v673 = vsel %vm451, %v268, 0.0
        %v674 = vadd.f32 %v672, %v673
        %v675 = vsel %vm451, %v269, 0.0
        %v676 = vadd.f32 %v674, %v675
        %v677 = vsel %vm451, %v270, 0.0
        %v678 = vadd.f32 %v676, %v677
        %v679 = vsel %vm451, %v271, 0.0
        %v680 = vadd.f32 %v678, %v679
        %v681 = vsel %vm451, %v272, 0.0
        %v682 = vadd.f32 %v680, %v681
        %v683 = vsel %vm451, %v273, 0.0
        %v684 = vadd.f32 %v682, %v683
        %v685 = vsel %vm451, %v274, 0.0
        %v686 = vadd.f32 %v684, %v685
        %v687 = vsel %vm451, %v275, 0.0
        %v688 = vadd.f32 %v686, %v687
        %v689 = vsel %vm451, %v276, 0.0
        %v690 = vadd.f32 %v688, %v689
        %v691 = vsel %vm451, %v277, 0.0
        %v692 = vadd.f32 %v690, %v691
        %v693 = vsel %vm451, %v278, 0.0
        %v694 = vadd.f32 %v692, %v693
        %v695 = vsel %vm451, %v279, 0.0
        %v696 = vadd.f32 %v694, %v695
        %v697 = vsel %vm451, %v280, 0.0
        %v698 = vadd.f32 %v696, %v697
        %v699 = vsel %vm451, %v281, 0.0
        %v700 = vadd.f32 %v698, %v699
        %v701 = vsel %vm451, %v282, 0.0
        %v702 = vadd.f32 %v700, %v701
        %v703 = vsel %vm451, %v283, 0.0
        %v704 = vadd.f32 %v702, %v703
        %v705 = vsel %vm451, %v284, 0.0
        %v706 = vadd.f32 %v704, %v705
        %v707 = vsel %vm451, %v285, 0.0
        %v708 = vadd.f32 %v706, %v707
        %v709 = vsel %vm451, %v286, 0.0
        %v710 = vadd.f32 %v708, %v709
        %v711 = vsel %vm451, %v287, 0.0
        %v712 = vadd.f32 %v710, %v711
        %v713 = vsel %vm451, %v288, 0.0
        %v714 = vadd.f32 %v712, %v713
        %v715 = vsel %vm451, %v289, 0.0
        %v716 = vadd.f32 %v714, %v715
        %v717 = vsel %vm451, %v290, 0.0
        %v718 = vadd.f32 %v716, %v717
        %v719 = vsel %vm451, %v291, 0.0
        %v720 = vadd.f32 %v718, %v719
        %v721 = vsel %vm451, %v292, 0.0
        %v722 = vadd.f32 %v720, %v721
        %v723 = vsel %vm451, %v293, 0.0
        %v724 = vadd.f32 %v722, %v723
        %v725 = vsel %vm451, %v294, 0.0
        %v726 = vadd.f32 %v724, %v725
        %v727 = vsel %vm451, %v295, 0.0
        %v728 = vadd.f32 %v726, %v727
        %v729 = vsel %vm451, %v296, 0.0
        %v730 = vadd.f32 %v728, %v729
        %v731 = vsel %vm451, %v297, 0.0
        %v732 = vadd.f32 %v730, %v731
        %v733 = vsel %vm451, %v298, 0.0
        %v734 = vadd.f32 %v732, %v733
        %v735 = vsel %vm451, %v299, 0.0
        %v736 = vadd.f32 %v734, %v735
        %v737 = vsel %vm451, %v300, 0.0
        %v738 = vadd.f32 %v736, %v737
        %v739 = vsel %vm451, %v301, 0.0
        %v740 = vadd.f32 %v738, %v739
        %v741 = vsel %vm451, %v302, 0.0
        %v742 = vadd.f32 %v740, %v741
        %v743 = vsel %vm451, %v303, 0.0
        %v744 = vadd.f32 %v742, %v743
        %v745 = vsel %vm451, %v304, 0.0
        %v746 = vadd.f32 %v744, %v745
        %v747 = vsel %vm451, %v305, 0.0
        %v748 = vadd.f32 %v746, %v747
        %v749 = vsel %vm451, %v306, 0.0
        %v750 = vadd.f32 %v748, %v749
        %v751 = vsel %vm451, %v307, 0.0
        %v752 = vadd.f32 %v750, %v751
        %v753 = vsel %vm451, %v308, 0.0
        %v754 = vadd.f32 %v752, %v753
        %v755 = vsel %vm451, %v309, 0.0
        %v756 = vadd.f32 %v754, %v755
        %v757 = vsel %vm451, %v310, 0.0
        %v758 = vadd.f32 %v756, %v757
        %v759 = vsel %vm451, %v311, 0.0
        %v760 = vadd.f32 %v758, %v759
        %v761 = vsel %vm451, %v312, 0.0
        %v762 = vadd.f32 %v760, %v761
        %v763 = vsel %vm451, %v313, 0.0
        %v764 = vadd.f32 %v762, %v763
        %v765 = vsel %vm451, %v314, 0.0
        %v766 = vadd.f32 %v764, %v765
        %v767 = vsel %vm451, %v315, 0.0
        %v768 = vadd.f32 %v766, %v767
        %v769 = vsel %vm451, %v316, 0.0
        %v770 = vadd.f32 %v768, %v769
        %v771 = vsel %vm451, %v317, 0.0
        %v772 = vadd.f32 %v770, %v771
        %v773 = vsel %vm451, %v318, 0.0
        %v774 = vadd.f32 %v772, %v773
        %v775 = vsel %vm451, %v319, 0.0
        %v776 = vadd.f32 %v774, %v775
        %v777 = vsel %vm451, %v320, 0.0
        %v778 = vadd.f32 %v776, %v777
        %v779 = vsel %vm451, %v321, 0.0
        %v780 = vadd.f32 %v778, %v779
        %v781 = vsel %vm451, %v322, 0.0
        %v782 = vadd.f32 %v780, %v781
        %v783 = vsel %vm451, %v323, 0.0
        %v784 = vadd.f32 %v782, %v783
        %v785 = vsel %vm451, %v324, 0.0
        %v786 = vadd.f32 %v784, %v785
        %v787 = vsel %vm451, %v325, 0.0
        %v788 = vadd.f32 %v786, %v787
        %v789 = vsel %vm451, %v326, 0.0
        %v790 = vadd.f32 %v788, %v789
        %v791 = vsel %vm451, %v327, 0.0
        %v792 = vadd.f32 %v790, %v791
        %v793 = vsel %vm451, %v328, 0.0
        %v794 = vadd.f32 %v792, %v793
        %v795 = vsel %vm451, %v329, 0.0
        %v796 = vadd.f32 %v794, %v795
        %v797 = vsel %vm451, %v330, 0.0
        %v798 = vadd.f32 %v796, %v797
        %v799 = vsel %vm451, %v331, 0.0
        %v800 = vadd.f32 %v798, %v799
        %v801 = vsel %vm451, %v332, 0.0
        %v802 = vadd.f32 %v800, %v801
        %v803 = vsel %vm451, %v333, 0.0
        %v804 = vadd.f32 %v802, %v803
        %v805 = vsel %vm451, %v334, 0.0
        %v806 = vadd.f32 %v804, %v805
        %v807 = vsel %vm451, %v335, 0.0
        %v808 = vadd.f32 %v806, %v807
        %v809 = vsel %vm451, %v336, 0.0
        %v810 = vadd.f32 %v808, %v809
        %v811 = vsel %vm451, %v337, 0.0
        %v812 = vadd.f32 %v810, %v811
        %v813 = vsel %vm451, %v338, 0.0
        %v814 = vadd.f32 %v812, %v813
        %v815 = vsel %vm451, %v339, 0.0
        %v816 = vadd.f32 %v814, %v815
        %v817 = vsel %vm451, %v340, 0.0
        %v818 = vadd.f32 %v816, %v817
        %v819 = vsel %vm451, %v341, 0.0
        %v820 = vadd.f32 %v818, %v819
        %v821 = vsel %vm451, %v342, 0.0
        %v822 = vadd.f32 %v820, %v821
        %v823 = vsel %vm451, %v343, 0.0
        %v824 = vadd.f32 %v822, %v823
        %v825 = vsel %vm451, %v344, 0.0
        %v826 = vadd.f32 %v824, %v825
        %v827 = vsel %vm451, %v345, 0.0
        %v828 = vadd.f32 %v826, %v827
        %v829 = vsel %vm451, %v346, 0.0
        %v830 = vadd.f32 %v828, %v829
        %v831 = vsel %vm451, %v347, 0.0
        %v832 = vadd.f32 %v830, %v831
        %v833 = vsel %vm451, %v348, 0.0
        %v834 = vadd.f32 %v832, %v833
        %v835 = vsel %vm451, %v349, 0.0
        %v836 = vadd.f32 %v834, %v835
        %v837 = vsel %vm451, %v350, 0.0
        %v838 = vadd.f32 %v836, %v837
        %v839 = vsel %vm451, %v351, 0.0
        %v840 = vadd.f32 %v838, %v839
        %v841 = vsel %vm451, %v352, 0.0
        %v842 = vadd.f32 %v840, %v841
        %v843 = vsel %vm451, %v353, 0.0
        %v844 = vadd.f32 %v842, %v843
        %v845 = vsel %vm451, %v354, 0.0
        %v846 = vadd.f32 %v844, %v845
        %v847 = vsel %vm451, %v355, 0.0
        %v848 = vadd.f32 %v846, %v847
        %v849 = vsel %vm451, %v356, 0.0
        %v850 = vadd.f32 %v848, %v849
        %v851 = vsel %vm451, %v357, 0.0
        %v852 = vadd.f32 %v850, %v851
        %v853 = vsel %vm451, %v358, 0.0
        %v854 = vadd.f32 %v852, %v853
        %v855 = vsel %vm451, %v359, 0.0
        %v856 = vadd.f32 %v854, %v855
        %v857 = vsel %vm451, %v360, 0.0
        %v858 = vadd.f32 %v856, %v857
        %v859 = vsel %vm451, %v361, 0.0
        %v860 = vadd.f32 %v858, %v859
        %v861 = vsel %vm451, %v362, 0.0
        %v862 = vadd.f32 %v860, %v861
        %v863 = vsel %vm451, %v363, 0.0
        %v864 = vadd.f32 %v862, %v863
        %v865 = vsel %vm451, %v364, 0.0
        %v866 = vadd.f32 %v864, %v865
        %v867 = vsel %vm451, %v365, 0.0
        %v868 = vadd.f32 %v866, %v867
        %v869 = vsel %vm451, %v366, 0.0
        %v870 = vadd.f32 %v868, %v869
        %v871 = vsel %vm451, %v367, 0.0
        %v872 = vadd.f32 %v870, %v871
        %v873 = vsel %vm451, %v368, 0.0
        %v874 = vadd.f32 %v872, %v873
        %v875 = vsel %vm451, %v369, 0.0
        %v876 = vadd.f32 %v874, %v875
        %v877 = vsel %vm451, %v370, 0.0
        %v878 = vadd.f32 %v876, %v877
        %v879 = vsel %vm451, %v371, 0.0
        %v880 = vadd.f32 %v878, %v879
        %v881 = vsel %vm451, %v372, 0.0
        %v882 = vadd.f32 %v880, %v881
        %v883 = vsel %vm451, %v373, 0.0
        %v884 = vadd.f32 %v882, %v883
        %v885 = vsel %vm451, %v374, 0.0
        %v886 = vadd.f32 %v884, %v885
        %v887 = vsel %vm451, %v375, 0.0
        %v888 = vadd.f32 %v886, %v887
        %v889 = vsel %vm451, %v376, 0.0
        %v890 = vadd.f32 %v888, %v889
        %v891 = vsel %vm451, %v377, 0.0
        %v892 = vadd.f32 %v890, %v891
        %v893 = vsel %vm451, %v378, 0.0
        %v894 = vadd.f32 %v892, %v893
        %v895 = vsel %vm451, %v379, 0.0
        %v896 = vadd.f32 %v894, %v895
        %v897 = vsel %vm451, %v380, 0.0
        %v898 = vadd.f32 %v896, %v897
        %v899 = vsel %vm451, %v381, 0.0
        %v900 = vadd.f32 %v898, %v899
        %v901 = vsel %vm451, %v382, 0.0
        %v902 = vadd.f32 %v900, %v901
        %v903 = vsel %vm451, %v383, 0.0
        %v904 = vadd.f32 %v902, %v903
        %v905 = vsel %vm451, %v384, 0.0
        %v906 = vadd.f32 %v904, %v905
        %v907 = vsel %vm451, %v385, 0.0
        %v908 = vadd.f32 %v906, %v907
        %v909 = vsel %vm451, %v386, 0.0
        %v910 = vadd.f32 %v908, %v909
        %v911 = vsel %vm451, %v387, 0.0
        %v912 = vadd.f32 %v910, %v911
        %v913 = vsel %vm451, %v388, 0.0
        %v914 = vadd.f32 %v912, %v913
        %v915 = vsel %vm451, %v389, 0.0
        %v916 = vadd.f32 %v914, %v915
        %v917 = vsel %vm451, %v390, 0.0
        %v918 = vadd.f32 %v916, %v917
        %v919 = vsel %vm451, %v391, 0.0
        %v920 = vadd.f32 %v918, %v919
        %v921 = vsel %vm451, %v392, 0.0
        %v922 = vadd.f32 %v920, %v921
        %v923 = vsel %vm451, %v393, 0.0
        %v924 = vadd.f32 %v922, %v923
        %v925 = vsel %vm451, %v394, 0.0
        %v926 = vadd.f32 %v924, %v925
        %v927 = vsel %vm451, %v395, 0.0
        %v928 = vadd.f32 %v926, %v927
        %v929 = vsel %vm451, %v396, 0.0
        %v930 = vadd.f32 %v928, %v929
        %v931 = vsel %vm451, %v397, 0.0
        %v932 = vadd.f32 %v930, %v931
        %v933 = vsel %vm451, %v398, 0.0
        %v934 = vadd.f32 %v932, %v933
        %v935 = vsel %vm451, %v399, 0.0
        %v936 = vadd.f32 %v934, %v935
        %v937 = vsel %vm451, %v400, 0.0
        %v938 = vadd.f32 %v936, %v937
        %v939 = vsel %vm451, %v401, 0.0
        %v940 = vadd.f32 %v938, %v939
        %v941 = vsel %vm451, %v402, 0.0
        %v942 = vadd.f32 %v940, %v941
        %v943 = vsel %vm451, %v403, 0.0
        %v944 = vadd.f32 %v942, %v943
        %v945 = vsel %vm451, %v404, 0.0
        %v946 = vadd.f32 %v944, %v945
        %v947 = vsel %vm451, %v405, 0.0
        %v948 = vadd.f32 %v946, %v947
        %v949 = vsel %vm451, %v406, 0.0
        %v950 = vadd.f32 %v948, %v949
        %v951 = vsel %vm451, %v407, 0.0
        %v952 = vadd.f32 %v950, %v951
        %v953 = vsel %vm451, %v408, 0.0
        %v954 = vadd.f32 %v952, %v953
        %v955 = vsel %vm451, %v409, 0.0
        %v956 = vadd.f32 %v954, %v955
        %v957 = vsel %vm451, %v410, 0.0
        %v958 = vadd.f32 %v956, %v957
        %v959 = vsel %vm451, %v411, 0.0
        %v960 = vadd.f32 %v958, %v959
        %v961 = vsel %vm451, %v412, 0.0
        %v962 = vadd.f32 %v960, %v961
        %v963 = vsel %vm451, %v413, 0.0
        %v964 = vadd.f32 %v962, %v963
        %v965 = vsel %vm451, %v414, 0.0
        %v966 = vadd.f32 %v964, %v965
        %v967 = vsel %vm451, %v415, 0.0
        %v968 = vadd.f32 %v966, %v967
        %v969 = vsel %vm451, %v416, 0.0
        %v970 = vadd.f32 %v968, %v969
        %v971 = vsel %vm451, %v417, 0.0
        %v972 = vadd.f32 %v970, %v971
        %v973 = vsel %vm451, %v418, 0.0
        %v974 = vadd.f32 %v972, %v973
        %v975 = vsel %vm451, %v419, 0.0
        %v976 = vadd.f32 %v974, %v975
        %v977 = vsel %vm451, %v420, 0.0
        %v978 = vadd.f32 %v976, %v977
        %v979 = vsel %vm451, %v421, 0.0
        %v980 = vadd.f32 %v978, %v979
        %v981 = vsel %vm451, %v422, 0.0
        %v982 = vadd.f32 %v980, %v981
        %v983 = vsel %vm451, %v423, 0.0
        %v984 = vadd.f32 %v982, %v983
        %v985 = vsel %vm451, %v424, 0.0
        %v986 = vadd.f32 %v984, %v985
        %v987 = vsel %vm451, %v425, 0.0
        %v988 = vadd.f32 %v986, %v987
        %v989 = vsel %vm451, %v426, 0.0
        %v990 = vadd.f32 %v988, %v989
        %v991 = vsel %vm451, %v427, 0.0
        %v992 = vadd.f32 %v990, %v991
        %v993 = vsel %vm451, %v428, 0.0
        %v994 = vadd.f32 %v992, %v993
        %v995 = vsel %vm451, %v429, 0.0
        %v996 = vadd.f32 %v994, %v995
        %v997 = vsel %vm451, %v430, 0.0
        %v998 = vadd.f32 %v996, %v997
        %v999 = vsel %vm451, %v431, 0.0
        %v1000 = vadd.f32 %v998, %v999
        %v1001 = vsel %vm451, %v432, 0.0
        %v1002 = vadd.f32 %v1000, %v1001
        %v1003 = vsel %vm451, %v433, 0.0
        %v1004 = vadd.f32 %v1002, %v1003
        %v1005 = vsel %vm451, %v434, 0.0
        %v1006 = vadd.f32 %v1004, %v1005
        %v1007 = vsel %vm451, %v435, 0.0
        %v1008 = vadd.f32 %v1006, %v1007
        %v1009 = vsel %vm451, %v436, 0.0
        %v1010 = vadd.f32 %v1008, %v1009
        %v1011 = vsel %vm451, %v437, 0.0
        %v1012 = vadd.f32 %v1010, %v1011
        %v1013 = vsel %vm451, %v438, 0.0
        %v1014 = vadd.f32 %v1012, %v1013
        %v1015 = vsel %vm451, %v439, 0.0
        %v1016 = vadd.f32 %v1014, %v1015
        %v1017 = vsel %vm451, %v440, 0.0
        %v1018 = vadd.f32 %v1016, %v1017
        %v1019 = vsel %vm451, %v441, 0.0
        %v1020 = vadd.f32 %v1018, %v1019
        %v1021 = vsel %vm451, %v442, 0.0
        %v1022 = vadd.f32 %v1020, %v1021
        %v1023 = vsel %vm451, %v443, 0.0
        %v1024 = vadd.f32 %v1022, %v1023
        %v1025 = vsel %vm451, %v444, 0.0
        %v1026 = vadd.f32 %v1024, %v1025
        %v1027 = vsel %vm451, %v445, 0.0
        %v1028 = vadd.f32 %v1026, %v1027
        %v1029 = vsel %vm451, %v446, 0.0
        %v1030 = vadd.f32 %v1028, %v1029
        %v1031 = vsel %vm451, %v447, 0.0
        %v1032 = vadd.f32 %v1030, %v1031
        %v1033 = vsel %vm451, %v448, 0.0
        %v1034 = vadd.f32 %v1032, %v1033
        %v1035 = vsel %vm451, %v449, 0.0
        %v1036 = vadd.f32 %v1034, %v1035
        %v1037 = vsel %vm451, %v450, 0.0
        %v1038 = vadd.f32 %v1036, %v1037
        %1039 = vadd.xlane.f32.xlu0 %v1038
        %v1040 = vpop.xlane.xlu0 %1039
        %v1041 = vadd.f32 %v156, %v1040
        %vm1042 = vcmask 5120
        %1043 = vst.msk [vmem:[#allocation2] sm:$0x3f] %vm1042, %v1041
        %p1044 = scmp.eq.s32.totalorder %s20, 3
        // Predicated region
        $region33: #{tpu_custom_call.1} parent=23 // pred_check
          %p1045 = pneg %p1044
        $region34: #{tpu_custom_call.1} parent=23 // pred_check_branch
          %1047 = sbr.rel (%p1045) target = $region36
        $region35: #{tpu_custom_call.1} parent=23 // pred_region
          %v1048 = vld [vmem:[#allocation2] sm:$0x3f]
          %v1049 = vmul.f32 %v1048, 6.643282e-06
          %1050 = vst.msk [vmem:[%s149] sm:$0x3f] %vm1042, %v1049
        $region36: #{tpu_custom_call.1} parent=23 // pred_fallthru
          _
        %p1051 = scmp.lt.s32.totalorder %s19, 0
        %s1052 = scalar_select %p1051, %s19, 0
        %s1053 = smul.addr %s1052, 8
        %s1054 = scalar_lea.vmem %s1, %s1053
        // Predicated region
        $region37: #{tpu_custom_call.1} parent=23 // pred_check
          %p1055 = pneg %p73
        $region38: #{tpu_custom_call.1} parent=23 // pred_check_branch
          %1057 = sbr.rel (%p1055) target = $region40
        $region39: #{tpu_custom_call.1} parent=23 // pred_region
          _
        $region40: #{tpu_custom_call.1} parent=23 // pred_fallthru
          _
        // Predicated region
        $region41: #{tpu_custom_call.1} parent=23 // pred_check
          %p1058 = pneg %p73
        $region42: #{tpu_custom_call.1} parent=23 // pred_check_branch
          %1060 = sbr.rel (%p1058) target = $region44
        $region43: #{tpu_custom_call.1} parent=23 // pred_region
          %p1061 = scmp.lt.s32.totalorder %s19, 0
          %s1062 = scalar_select %p1061, %s19, 0
          %s1063 = smul.addr %s1062, 8
          %s1064 = scalar_lea.vmem %s1, %s1063
        $region44: #{tpu_custom_call.1} parent=23 // pred_fallthru
          _
      $region24: #{tpu_custom_call.1} parent=5 // pred_fallthru
        _
      %p1065 = scmp.le.s32.totalorder 2, %s10
      // Predicated region
      $region45: #{tpu_custom_call.1} parent=5 // pred_check
        %p1066 = pneg %p1065
      $region46: #{tpu_custom_call.1} parent=5 // pred_check_branch
        %1068 = sbr.rel (%p1066) target = $region48
      $region47: #{tpu_custom_call.1} parent=5 // pred_region
        %s1069 = ssub.s32 %s10, 2
      $region48: #{tpu_custom_call.1} parent=5 // pred_fallthru
        _
    $region6: #{tpu_custom_call.1} parent=1 // loop_footer
      %s14 = sadd.s32 1, %s10
    $region7: #{tpu_custom_call.1} parent=1 // loop_footer_branch
      %9 = sbr.rel target = $region3
    $region8: #{tpu_custom_call.1} parent=1 // loop_exit
      _
    %1070 = vsyncpa [#allocation4], 1
    %s1071 = scalar_lea.sflag [#allocation4], 1
    %1072 = vsyncpa %s1071, 1

</llo_original>
